<compile_context>
chip_gen: v6e
topology: v6e:2x2x1
jax: 0.10.0
libtpu: 0.0.40
codegen_flags: <defaults>
</compile_context>

<pallas_src>
import functools

import jax
import jax.numpy as jnp
from jax.experimental import pallas as pl
from jax.experimental.pallas import tpu as pltpu


def _modulatory_kernel(x_ref, wt_ref, b_ref, o_ref):
    """Fused y = sigmoid(x @ W.T + b) on one batch tile.

    x_ref : (TM, K)  input tile (native dtype, no upcast -> MXU native path)
    wt_ref: (K, N)   transposed weight (whole, small)
    b_ref : (1, N)   bias (whole, small, f32)
    o_ref : (TM, N)  output tile
    """
    y = jnp.dot(x_ref[...], wt_ref[...], preferred_element_type=jnp.float32)
    y = y + b_ref[...]
    # jax.nn.sigmoid -> exp + reciprocal on the EUP slot (free next to the DMA
    # / MXU work), instead of a VPU divide sequence.
    o_ref[...] = jax.nn.sigmoid(y).astype(o_ref.dtype)


def _round_up(n: int, m: int) -> int:
    return ((n + m - 1) // m) * m


def _sublane_multiple(dtype) -> int:
    # Minimum second-to-last tile dim: f32 -> 8, bf16 -> 16, int8/fp8 -> 32.
    itemsize = jnp.dtype(dtype).itemsize
    return 8 * max(1, 4 // max(1, itemsize))


@functools.partial(jax.jit, static_argnames=("tile_m", "min_pallas_batch"))
def modulatory_forward(global_state, weight, bias, *, tile_m=4096,
                       min_pallas_batch=0):
    """sigmoid(global_state @ weight.T + bias) via a Pallas TPU kernel.

    global_state: (B, K) ; weight: (N, K) (PyTorch nn.Linear layout) ; bias: (N,)

    tile_m=4096 keeps the double-buffered lane-padded blocks (~tm*2 KiB) inside
    v5e's 16 MiB scoped-VMEM default; on v6e/v7x 4096-8192 is fine too.
    """
    B, K = global_state.shape
    N = weight.shape[0]

    # Small-batch fast path: with K=32, N=10 the MXU is ~1% utilized and the
    # whole op is dispatch-bound; plain XLA is cheaper below ~1-2k rows.
    if B < min_pallas_batch:
        y = global_state.astype(jnp.float32) @ weight.T.astype(jnp.float32)
        return jax.nn.sigmoid(y + bias.astype(jnp.float32)).astype(
            global_state.dtype)

    sub = _sublane_multiple(global_state.dtype)
    tm = min(_round_up(tile_m, sub), _round_up(B, sub))
    if tm >= B:
        tm = B  # single block == full array dim: always a legal block shape
    grid_m = pl.cdiv(B, tm)

    wt = weight.T.astype(global_state.dtype)   # (K, N), matched MXU input dtype
    b2 = bias.reshape(1, N).astype(jnp.float32)

    itemsize = jnp.dtype(global_state.dtype).itemsize
    cost = pl.CostEstimate(
        flops=2 * B * K * N,
        transcendentals=B * N,
        bytes_accessed=B * K * itemsize + B * N * itemsize
        + K * N * itemsize + N * 4,
    )

    # TODO(synk): if a profile ever shows the masked (N=10 < 128 lanes) stores
    # binding, emit a transposed (N, B) output so batch is the lane dim.
    return pl.pallas_call(
        _modulatory_kernel,
        out_shape=jax.ShapeDtypeStruct((B, N), global_state.dtype),
        grid_spec=pltpu.PrefetchScalarGridSpec(
            num_scalar_prefetch=0,
            grid=(grid_m,),
            in_specs=[
                pl.BlockSpec((tm, K), lambda i: (i, 0)),   # batch-tiled input
                pl.BlockSpec((K, N), lambda i: (0, 0)),    # full (small) weight
                pl.BlockSpec((1, N), lambda i: (0, 0)),    # full bias
            ],
            out_specs=pl.BlockSpec((tm, N), lambda i: (i, 0)),
        ),
        compiler_params=pltpu.CompilerParams(
            dimension_semantics=("parallel",),   # batch tiles are independent
        ),
        cost_estimate=cost,
    )(global_state, wt, b2)


class ModulatoryControllerPallas:
    """Conceptual module for bio-inspired modulation (JAX/Pallas)."""

    def __init__(self, control_dim, key, out_dim=10, *, tile_m=4096,
                 min_pallas_batch=0):
        # Mirror torch.nn.Linear default init: U(-1/sqrt(fan_in), 1/sqrt(fan_in)).
        kw, kb = jax.random.split(key)
        bound = 1.0 / (control_dim ** 0.5)
        self.weight = jax.random.uniform(
            kw, (out_dim, control_dim), minval=-bound, maxval=bound,
            dtype=jnp.float32)
        self.bias = jax.random.uniform(
            kb, (out_dim,), minval=-bound, maxval=bound, dtype=jnp.float32)
        self.tile_m = tile_m
        self.min_pallas_batch = min_pallas_batch

    def __call__(self, global_state):
        return modulatory_forward(
            global_state, self.weight, self.bias,
            tile_m=self.tile_m, min_pallas_batch=self.min_pallas_batch)


if __name__ == "__main__":
    key = jax.random.PRNGKey(0)
    k_param, k_x, k_x2 = jax.random.split(key, 3)

    batch, control_dim = 2, 32
    # min_pallas_batch=0 forces the Pallas path even at batch=2 for the demo.
    module = ModulatoryControllerPallas(control_dim, k_param,
                                        min_pallas_batch=0)
    global_state = jax.random.normal(k_x, (batch, control_dim),
                                     dtype=jnp.float32)

    out = jax.block_until_ready(module(global_state))
    ref = jax.block_until_ready(
        jax.nn.sigmoid(global_state @ module.weight.T + module.bias))

    assert out.shape == (batch, 10)
    assert out.dtype == jnp.float32
    assert bool(jnp.all(jnp.abs(out - ref) < 1e-5))

    # Second check: a non-multiple batch with a multi-step grid exercises the
    # ragged last tile (masked boundary writes) introduced by dropping pad/slice.
    batch2 = 300
    x2 = jax.random.normal(k_x2, (batch2, control_dim), dtype=jnp.float32)
    out2 = jax.block_until_ready(
        modulatory_forward(x2, module.weight, module.bias,
                           tile_m=128, min_pallas_batch=0))
    ref2 = jax.block_until_ready(
        jax.nn.sigmoid(x2 @ module.weight.T + module.bias))
    assert out2.shape == (batch2, 10)
    assert bool(jnp.all(jnp.abs(out2 - ref2) < 1e-5))

    print("KERNEL_OK")
</pallas_src>

<mosaic_0001>
module attributes {stable_mosaic.version = 11 : i64} {
  func.func @_modulatory_kernel(%arg0: i32, %arg1: memref<2x32xf32, #tpu.memory_space<vmem>>, %arg2: memref<32x10xf32, #tpu.memory_space<vmem>>, %arg3: memref<1x10xf32, #tpu.memory_space<vmem>>, %arg4: memref<2x10xf32, #tpu.memory_space<vmem>>) attributes {dimension_semantics = [#tpu.dimension_semantics<parallel>], iteration_bounds = array<i64: 1>, scalar_prefetch = 0 : i64, scratch_operands = 0 : i64, tpu.core_type = #tpu.core_type<tc>, window_params = [{transform_indices = @transform_0, window_bounds = array<i64: 2, 32>}, {pipeline_mode = #tpu.pipeline_mode<synchronous>, transform_indices = @transform_1, window_bounds = array<i64: 32, 10>}, {pipeline_mode = #tpu.pipeline_mode<synchronous>, transform_indices = @transform_2, window_bounds = array<i64: 1, 10>}, {transform_indices = @transform_3, window_bounds = array<i64: 2, 10>}]} {
    %c0 = arith.constant 0 : index
    %c0_0 = arith.constant 0 : index
    %0 = vector.load %arg1[%c0, %c0_0] : memref<2x32xf32, #tpu.memory_space<vmem>>, vector<2x32xf32>
    %c0_1 = arith.constant 0 : index
    %c0_2 = arith.constant 0 : index
    %1 = vector.load %arg2[%c0_1, %c0_2] : memref<32x10xf32, #tpu.memory_space<vmem>>, vector<32x10xf32>
    %cst = arith.constant dense<0.000000e+00> : vector<2x10xf32>
    %2 = tpu.matmul %0, %1, %cst {dimension_numbers = #tpu.dot_dimension_numbers<[1], [0], [0], [1], [0, 0, 1, 1], [], []>} : vector<2x32xf32>, vector<32x10xf32>, vector<2x10xf32> -> vector<2x10xf32>
    %c0_3 = arith.constant 0 : index
    %c0_4 = arith.constant 0 : index
    %3 = vector.load %arg3[%c0_3, %c0_4] : memref<1x10xf32, #tpu.memory_space<vmem>>, vector<1x10xf32>
    %4 = vector.broadcast %3 : vector<1x10xf32> to vector<2x10xf32>
    %5 = arith.addf %2, %4 : vector<2x10xf32>
    %6 = arith.negf %5 : vector<2x10xf32>
    %7 = math.exp %6 : vector<2x10xf32>
    %cst_5 = arith.constant 1.000000e+00 : f32
    %8 = vector.broadcast %cst_5 : f32 to vector<2x10xf32>
    %9 = arith.addf %8, %7 : vector<2x10xf32>
    %10 = arith.divf %8, %9 : vector<2x10xf32>
    %c0_6 = arith.constant 0 : index
    %c0_7 = arith.constant 0 : index
    %11 = vector.load %arg4[%c0_6, %c0_7] : memref<2x10xf32, #tpu.memory_space<vmem>>, vector<2x10xf32>
    tpu.vector_store %arg4[%c0_6, %c0_7], %10 {strides = array<i32>} : memref<2x10xf32, #tpu.memory_space<vmem>>, vector<2x10xf32>,
    return
  }
  func.func @transform_0(%arg0: i32) -> (i32, i32) {
    %c0_i32 = arith.constant 0 : i32
    %c0_i32_0 = arith.constant 0 : i32
    return %arg0, %c0_i32 : i32, i32
  }
  func.func @transform_1(%arg0: i32) -> (i32, i32) {
    %c0_i32 = arith.constant 0 : i32
    %c0_i32_0 = arith.constant 0 : i32
    %c0_i32_1 = arith.constant 0 : i32
    return %c0_i32, %c0_i32_0 : i32, i32
  }
  func.func @transform_2(%arg0: i32) -> (i32, i32) {
    %c0_i32 = arith.constant 0 : i32
    %c0_i32_0 = arith.constant 0 : i32
    %c0_i32_1 = arith.constant 0 : i32
    return %c0_i32, %c0_i32_0 : i32, i32
  }
  func.func @transform_3(%arg0: i32) -> (i32, i32) {
    %c0_i32 = arith.constant 0 : i32
    %c0_i32_0 = arith.constant 0 : i32
    return %arg0, %c0_i32 : i32, i32
  }
}

</mosaic_0001>

<llo_original>
// kernel: modulatory_forward.1
$region0: #{modulatory_forward.1}
  #allocation0 [shape = 'u32[]', space=smem, size = 0x4, offset = 0x4, fixed_abs, tag = 'smem constant byte address 0x4 - core index']
  #allocation1 [shape = 'u32[144,128]{1,0:T(1,128)}', space=vmem, size = 0x12000, scoped, tag = 'internal scratch']
  %s0 = inlined_call_operand.vmem [shape: f32[2,32], index: 0, kind: input, shape index: {}]
  %s1 = inlined_call_operand.vmem [shape: f32[32,10], index: 1, kind: input, shape index: {}]
  %s2 = inlined_call_operand.vmem [shape: f32[1,10], index: 2, kind: input, shape index: {}]
  %s3 = inlined_call_operand.hbm [shape: f32[2,10], index: 3, kind: output, shape index: {}]
  %s4 = sld [smem:[#allocation0]]
  $region22: #{modulatory_forward.1} parent=0
    _
  %s6 = ssub.s32 1, %s4
  %s7 = scalar_select 0, %s6, %s4
  $region1: #{modulatory_forward.1} parent=0
    #allocation2 [shape = 'u8[1024]{0}', space=vmem, size = 0x400, scoped, tag = 'output window, operand 0, single buffered']
    #allocation3 [shape = 's32[1]{0}', space=sflag, size = 0x4, scoped, tag = 'scoped memory for modulatory_forward.1']
    %8 = vsyncpa [#allocation3], 0
    // Predicated region
    $region2: #{modulatory_forward.1} parent=1 // pred_check
      _
    $region3: #{modulatory_forward.1} parent=1 // pred_check_branch
      %10 = sbr.rel (0) target = $region5
    $region4: #{modulatory_forward.1} parent=1 // pred_region
      _
    $region5: #{modulatory_forward.1} parent=1 // pred_fallthru
      _
    // Predicated region
    $region6: #{modulatory_forward.1} parent=1 // pred_check
      _
    $region7: #{modulatory_forward.1} parent=1 // pred_check_branch
      %12 = sbr.rel (0) target = $region9
    $region8: #{modulatory_forward.1} parent=1 // pred_region
      _
    $region9: #{modulatory_forward.1} parent=1 // pred_fallthru
      _
    // Predicated region
    $region10: #{modulatory_forward.1} parent=1 // pred_check
      _
    $region11: #{modulatory_forward.1} parent=1 // pred_check_branch
      %14 = sbr.rel (0) target = $region13
    $region12: #{modulatory_forward.1} parent=1 // pred_region
      _
    $region13: #{modulatory_forward.1} parent=1 // pred_fallthru
      _
    %v15 = vld [vmem:[%s0] sm:$0x3]
    %v16 = vld [vmem:[%s1] sm:$0xff]
    %v17 = vld [vmem:[%s1 + $0x8] sm:$0xff]
    %v18 = vld [vmem:[%s1 + $0x10] sm:$0xff]
    %v19 = vld [vmem:[%s1 + $0x18] sm:$0xff]
    %v20 = vld [vmem:[%s2] sm:$0x1]
    %v22 = vlaneseq
    %v23 = vshrl.u32 %v22, 7
    %v24 = vsub.s32 0, %v23
    %v25 = vrot.slane %v20, %v24
    %vm27 = vcmask 261120
    %v29 = vsel %vm27, %v15, 0
    %31 = vmatprep.subr.mxu0 0.0
    %32 = vmatpush1.msra.mxu0 0.0
    %33 = vmatprep.subr.mxu0 0.0
    %34 = vmatpush1.msra.mxu0 0.0
    %35 = vmatprep.subr.mxu0 0.0
    %36 = vmatpush1.msra.mxu0 0.0
    %37 = vmatprep.subr.mxu0 0.0
    %38 = vmatpush1.msra.mxu0 0.0
    %39 = vmatprep.subr.mxu0 0.0
    %40 = vmatpush1.msra.mxu0 0.0
    %41 = vmatprep.subr.mxu0 0.0
    %42 = vmatpush1.msra.mxu0 0.0
    %43 = vmatprep.subr.mxu0 0.0
    %44 = vmatpush1.msra.mxu0 0.0
    %45 = vmatprep.subr.mxu0 0.0
    %46 = vmatpush1.msra.mxu0 0.0
    %47 = vmatprep.subr.mxu0 0.0
    %48 = vmatpush1.msra.mxu0 0.0
    %49 = vmatprep.subr.mxu0 0.0
    %50 = vmatpush1.msra.mxu0 0.0
    %51 = vmatprep.subr.mxu0 0.0
    %52 = vmatpush1.msra.mxu0 0.0
    %53 = vmatprep.subr.mxu0 0.0
    %54 = vmatpush1.msra.mxu0 0.0
    %55 = vmatprep.subr.mxu0 0.0
    %56 = vmatpush1.msra.mxu0 %v19
    %57 = vmatprep.subr.mxu0 0.0
    %58 = vmatpush1.msra.mxu0 %v18
    %59 = vmatprep.subr.mxu0 0.0
    %60 = vmatpush1.msra.mxu0 %v17
    %61 = vmatprep.subr.mxu0 0.0
    %62 = vmatpush1.msra.mxu0 %v16
    %63 = vmatprep.subr.mxu0 0.0
    %64 = vmatpush2.msra.mxu0 0.0
    %65 = vmatprep.subr.mxu0 0.0
    %66 = vmatpush2.msra.mxu0 0.0
    %67 = vmatprep.subr.mxu0 0.0
    %68 = vmatpush2.msra.mxu0 0.0
    %69 = vmatprep.subr.mxu0 0.0
    %70 = vmatpush2.msra.mxu0 0.0
    %71 = vmatprep.subr.mxu0 0.0
    %72 = vmatpush2.msra.mxu0 0.0
    %73 = vmatprep.subr.mxu0 0.0
    %74 = vmatpush2.msra.mxu0 0.0
    %75 = vmatprep.subr.mxu0 0.0
    %76 = vmatpush2.msra.mxu0 0.0
    %77 = vmatprep.subr.mxu0 0.0
    %78 = vmatpush2.msra.mxu0 0.0
    %79 = vmatprep.subr.mxu0 0.0
    %80 = vmatpush2.msra.mxu0 0.0
    %81 = vmatprep.subr.mxu0 0.0
    %82 = vmatpush2.msra.mxu0 0.0
    %83 = vmatprep.subr.mxu0 0.0
    %84 = vmatpush2.msra.mxu0 0.0
    %85 = vmatprep.subr.mxu0 0.0
    %86 = vmatpush2.msra.mxu0 0.0
    %87 = vmatprep.subr.mxu0 0.0
    %88 = vmatpush2.msra.mxu0 0.0
    %89 = vmatprep.subr.mxu0 0.0
    %90 = vmatpush2.msra.mxu0 0.0
    %91 = vmatprep.subr.mxu0 0.0
    %92 = vmatpush2.msra.mxu0 0.0
    %93 = vmatprep.subr.mxu0 0.0
    %94 = vmatpush2.msra.mxu0 0.0
    %95 = vmatprep.mubr.f32.mxu0 0.0
    %96 = vmatmul.mubr.f32.gmra.mxu0 %v29
    %v97 = vpop.f32.mrf.mxu0
    %v98 = vadd.f32 %v25, %v97
    %v99 = vpop.f32.mrf.mxu0
    %100 = vdwg.mxu0
    %v101 = vxor.u32 %v98, 2147483648
    %v102 = vmul.f32 %v101, 1.442695
    %v103 = vpow.pop %v102
    %v104 = vadd.f32 %v103, 1.0
    %v105 = vrcp.pop %v104
    %v106 = vmul.f32 1.0, %v105
    %vm107 = vcmask 74752
    %108 = vst.msk [vmem:[#allocation2] sm:$0x3] %vm107, %v106
    // Predicated region
    $region14: #{modulatory_forward.1} parent=1 // pred_check
      _
    $region15: #{modulatory_forward.1} parent=1 // pred_check_branch
      %110 = sbr.rel (0) target = $region17
    $region16: #{modulatory_forward.1} parent=1 // pred_region
      %s112 = ssub.s32 32, 32
      %113 = vsyncadd [#allocation3], %s112
      %s115 = sshll.u32 [#allocation2], 4
      %s116 = int_to_ptr.vmem [resolvable:$true] %s115
      %118 = dma.vmem_to_hbm [thread:$0]  %s116, 32, %s3, [#allocation3]
    $region17: #{modulatory_forward.1} parent=1 // pred_fallthru
      _
    // Predicated region
    $region18: #{modulatory_forward.1} parent=1 // pred_check
      _
    $region19: #{modulatory_forward.1} parent=1 // pred_check_branch
      %120 = sbr.rel (0) target = $region21
    $region20: #{modulatory_forward.1} parent=1 // pred_region
      %121 = dma.done [#allocation3], 32
    $region21: #{modulatory_forward.1} parent=1 // pred_fallthru
      _
    %122 = vsyncpa [#allocation3], 1

</llo_original>
